<compile_context>
chip_gen: v5e
topology: v5e:2x2
jax: 0.10.0
libtpu: 0.0.40
codegen_flags: <defaults>
</compile_context>

<pallas_src>
import jax
import jax.numpy as jnp
from jax.experimental import pallas as pl
from jax.experimental.pallas import tpu as pltpu


def _round_up(x, m):
    return ((x + m - 1) // m) * m


def _cdiv(a, b):
    return -(-a // b)


def _has_two_tensorcores():
    """True on chips where 'parallel' grid axes shard across 2 TensorCores."""
    try:
        kind = jax.devices()[0].device_kind.lower()
    except Exception:
        return False
    return any(tag in kind for tag in ("v7", "v4", "v5p"))


def _choose_grid(rows, tile_rows, sublane, two_cores):
    """Pick (tile_r, n_steps). Single-TC: biggest tile <= tile_rows.
    Dual-TC: even number of >= 2 non-empty steps when rows permit."""
    tile_r = max(sublane, _round_up(min(int(tile_rows), rows), sublane))
    n = _cdiv(rows, tile_r)
    if two_cores and rows > sublane:
        target = max(2, n + (n % 2))                  # smallest even >= max(2, n)
        t = max(sublane, _round_up(_cdiv(rows, target), sublane))
        n2 = _cdiv(rows, t)
        if n2 >= 2 and n2 % 2 == 0:
            return t, n2
    return tile_r, n


def _fusion_kernel(x1_ref, x2_ref, wd1_ref, wd2_ref, expand_ref, bd_ref,
                   fused_ref, *alpha_out):
    """One tile of (lane-packed) batch rows per grid step."""
    x1 = x1_ref[...]                                   # (TM, Dp), input dtype
    x2 = x2_ref[...]

    # Score difference d = s0 - s1 per packed batch row -> (TM, P) in f32.
    d = (jnp.dot(x1, wd1_ref[...], preferred_element_type=jnp.float32)
         + jnp.dot(x2, wd2_ref[...], preferred_element_type=jnp.float32)
         + bd_ref[0])

    # softmax over 2 classes == sigmoid of the score difference.
    a0 = 1.0 / (1.0 + jnp.exp(-d))                     # (TM, P) f32

    # Broadcast alpha0 from the P packed columns to the lanes holding the
    # corresponding feature blocks (tiny matmul; MXU slot is otherwise idle).
    a0_lanes = jnp.dot(a0, expand_ref[...],
                       preferred_element_type=jnp.float32).astype(x1.dtype)

    # fused = alpha0*x1 + (1-alpha0)*x2 == x2 + alpha0*(x1 - x2)   (3 VALU ops)
    fused_ref[...] = (x2 + a0_lanes * (x1 - x2)).astype(fused_ref.dtype)

    if alpha_out:
        alpha_out[0][...] = a0


def attention_fusion(x1, x2, w, b, *, tile_rows=4096, return_alpha=True):
    """x1, x2: (N, D). w: (2, 2*D) PyTorch nn.Linear weight. b: (2,) bias.

    Returns fused (N, D) in x1.dtype, and alpha (N, 2) float32 if return_alpha.
    """
    N, D = x1.shape
    assert x2.shape == (N, D)
    assert w.shape == (2, 2 * D) and b.shape == (2,)
    in_dt = x1.dtype
    itemsize = jnp.dtype(in_dt).itemsize
    sublane = {4: 8, 2: 16, 1: 32}.get(itemsize, 8)

    # Lane packing factor: pack 128 // D batch rows per 128-lane vreg row, but
    # ONLY when the (N, D) -> (N//pack, D*pack) reshape is a free bitcast
    # (N % pack == 0).  Otherwise fall back to pack=1: no wrapper copies ever.
    pack = 1
    if 0 < D < 128 and 128 % D == 0 and N % (128 // D) == 0:
        pack = 128 // D
    dp = D * pack
    rows = N // pack

    # Softmax-over-2 == sigmoid(score difference): only weight/bias diffs needed.
    wf = w.astype(jnp.float32)
    bf = b.astype(jnp.float32)
    wd1 = wf[0, :D] - wf[1, :D]                        # (D,)
    wd2 = wf[0, D:] - wf[1, D:]                        # (D,)
    bd = (bf[0] - bf[1]).reshape(1)                    # (1,) -> SMEM scalar

    eye = jnp.eye(pack, dtype=jnp.float32)
    # Block-diagonal packed diff-weights (Dp, P): column j scores packed row j.
    wd1_p = jnp.kron(eye, wd1.reshape(D, 1)).astype(in_dt)
    wd2_p = jnp.kron(eye, wd2.reshape(D, 1)).astype(in_dt)
    # (P, Dp) 0/1 matrix broadcasting alpha0 column j over lanes j*D:(j+1)*D.
    expand = jnp.kron(eye, jnp.ones((1, D), jnp.float32))

    # Bitcast reshape into packed layout (no data movement); pack==1 is a no-op.
    x1v = x1 if pack == 1 else x1.reshape(rows, dp)
    x2v = x2 if pack == 1 else x2.reshape(rows, dp)

    tile_r, n_steps = _choose_grid(rows, tile_rows, sublane,
                                   _has_two_tensorcores())

    # VMEM budget from actual need (double-buffered streams + resident weights),
    # ~2x slack; keeps well under v7x's 64 MiB physical VMEM.
    tile_bytes = tile_r * dp * itemsize
    vmem_need = (2 * 2 * tile_bytes                    # x1, x2 inputs
                 + 2 * tile_bytes                      # fused output
                 + (2 * tile_r * pack * 4 if return_alpha else 0)
                 + 2 * (2 * dp * pack * itemsize + pack * dp * 4))
    vmem_limit = int(min(max(2 * vmem_need, 4 << 20), 64 << 20))

    out_shapes = [jax.ShapeDtypeStruct((rows, dp), in_dt)]
    out_specs = [pl.BlockSpec((tile_r, dp), lambda i: (i, 0))]
    if return_alpha:
        out_shapes.append(jax.ShapeDtypeStruct((rows, pack), jnp.float32))
        out_specs.append(pl.BlockSpec((tile_r, pack), lambda i: (i, 0)))

    outs = pl.pallas_call(
        _fusion_kernel,
        out_shape=tuple(out_shapes),
        grid_spec=pltpu.PrefetchScalarGridSpec(
            num_scalar_prefetch=0,
            grid=(n_steps,),
            in_specs=[
                pl.BlockSpec((tile_r, dp), lambda i: (i, 0)),       # x1 tile
                pl.BlockSpec((tile_r, dp), lambda i: (i, 0)),       # x2 tile
                pl.BlockSpec((dp, pack), lambda i: (0, 0)),         # wd1 (resident)
                pl.BlockSpec((dp, pack), lambda i: (0, 0)),         # wd2 (resident)
                pl.BlockSpec((pack, dp), lambda i: (0, 0)),         # alpha expander
                pl.BlockSpec(memory_space=pltpu.MemorySpace.SMEM),  # bias diff
            ],
            out_specs=out_specs,
        ),
        compiler_params=pltpu.CompilerParams(
            dimension_semantics=("parallel",),
            vmem_limit_bytes=vmem_limit,
        ),
    )(x1v, x2v, wd1_p, wd2_p, expand, bd)

    fused = outs[0] if pack == 1 else outs[0].reshape(N, D)   # bitcast back
    if not return_alpha:
        return fused
    a0 = outs[1].reshape(N)                                   # tiny (N,) array
    alpha = jnp.stack([a0, 1.0 - a0], axis=-1)
    return fused, alpha


def _reference(x1, x2, w, b):
    x = jnp.concatenate([x1, x2], axis=-1)
    scores = x @ w.T + b
    alpha = jax.nn.softmax(scores, axis=-1)
    fused = alpha[..., 0:1] * x1 + alpha[..., 1:2] * x2
    return fused, alpha


if __name__ == "__main__":
    key = jax.random.PRNGKey(0)
    k1, k2, kw, kb = jax.random.split(key, 4)

    D = 64  # module default in_dim
    # Deterministic "nn.Linear(2*D, 2)" parameters (synthetic, not a checkpoint).
    bound = 1.0 / jnp.sqrt(2.0 * D)
    w = jax.random.uniform(kw, (2, 2 * D), jnp.float32, -bound, bound)
    b = jax.random.uniform(kb, (2,), jnp.float32, -bound, bound)

    # Case 1: N % pack == 0 -> lane-packed fast path, zero wrapper copies.
    # Case 2: ragged N      -> pack=1 fallback path (still no pad / slice).
    for N in (40, 37):
        x1 = jax.random.normal(k1, (N, D), jnp.float32)
        x2 = jax.random.normal(k2, (N, D), jnp.float32)

        fused, alpha = attention_fusion(x1, x2, w, b)
        jax.block_until_ready((fused, alpha))

        ref_fused, ref_alpha = _reference(x1, x2, w, b)
        assert fused.shape == ref_fused.shape and alpha.shape == ref_alpha.shape
        assert jnp.allclose(fused, ref_fused, atol=1e-4, rtol=1e-4)
        assert jnp.allclose(alpha, ref_alpha, atol=1e-4, rtol=1e-4)

        # fused-only path (skips the narrow alpha store stream).
        fused_only = attention_fusion(x1, x2, w, b, return_alpha=False)
        jax.block_until_ready(fused_only)
        assert jnp.allclose(fused_only, ref_fused, atol=1e-4, rtol=1e-4)

    print("KERNEL_OK")
</pallas_src>

<mosaic_0001>
module attributes {stable_mosaic.version = 11 : i64} {
  func.func @_fusion_kernel(%arg0: i32, %arg1: memref<24x128xf32, #tpu.memory_space<vmem>>, %arg2: memref<24x128xf32, #tpu.memory_space<vmem>>, %arg3: memref<128x2xf32, #tpu.memory_space<vmem>>, %arg4: memref<128x2xf32, #tpu.memory_space<vmem>>, %arg5: memref<2x128xf32, #tpu.memory_space<vmem>>, %arg6: memref<1xf32, #tpu.memory_space<smem>>, %arg7: memref<24x128xf32, #tpu.memory_space<vmem>>, %arg8: memref<24x2xf32, #tpu.memory_space<vmem>>) attributes {dimension_semantics = [#tpu.dimension_semantics<parallel>], iteration_bounds = array<i64: 1>, scalar_prefetch = 0 : i64, scratch_operands = 0 : i64, tpu.core_type = #tpu.core_type<tc>, window_params = [{transform_indices = @transform_0, window_bounds = array<i64: 24, 128>}, {transform_indices = @transform_1, window_bounds = array<i64: 24, 128>}, {pipeline_mode = #tpu.pipeline_mode<synchronous>, transform_indices = @transform_2, window_bounds = array<i64: 128, 2>}, {pipeline_mode = #tpu.pipeline_mode<synchronous>, transform_indices = @transform_3, window_bounds = array<i64: 128, 2>}, {pipeline_mode = #tpu.pipeline_mode<synchronous>, transform_indices = @transform_4, window_bounds = array<i64: 2, 128>}, {transform_indices = @transform_5, window_bounds = array<i64: 1>}, {transform_indices = @transform_6, window_bounds = array<i64: 24, 128>}, {transform_indices = @transform_7, window_bounds = array<i64: 24, 2>}]} {
    %c0 = arith.constant 0 : index
    %c0_0 = arith.constant 0 : index
    %0 = vector.load %arg1[%c0, %c0_0] : memref<24x128xf32, #tpu.memory_space<vmem>>, vector<24x128xf32>
    %c0_1 = arith.constant 0 : index
    %c0_2 = arith.constant 0 : index
    %1 = vector.load %arg2[%c0_1, %c0_2] : memref<24x128xf32, #tpu.memory_space<vmem>>, vector<24x128xf32>
    %c0_3 = arith.constant 0 : index
    %c0_4 = arith.constant 0 : index
    %2 = vector.load %arg3[%c0_3, %c0_4] : memref<128x2xf32, #tpu.memory_space<vmem>>, vector<128x2xf32>
    %cst = arith.constant dense<0.000000e+00> : vector<24x2xf32>
    %3 = tpu.matmul %0, %2, %cst {dimension_numbers = #tpu.dot_dimension_numbers<[1], [0], [0], [1], [0, 0, 1, 1], [], []>} : vector<24x128xf32>, vector<128x2xf32>, vector<24x2xf32> -> vector<24x2xf32>
    %c0_5 = arith.constant 0 : index
    %c0_6 = arith.constant 0 : index
    %4 = vector.load %arg4[%c0_5, %c0_6] : memref<128x2xf32, #tpu.memory_space<vmem>>, vector<128x2xf32>
    %cst_7 = arith.constant dense<0.000000e+00> : vector<24x2xf32>
    %5 = tpu.matmul %1, %4, %cst_7 {dimension_numbers = #tpu.dot_dimension_numbers<[1], [0], [0], [1], [0, 0, 1, 1], [], []>} : vector<24x128xf32>, vector<128x2xf32>, vector<24x2xf32> -> vector<24x2xf32>
    %6 = arith.addf %3, %5 : vector<24x2xf32>
    %c0_8 = arith.constant 0 : index
    %7 = memref.load %arg6[%c0_8] : memref<1xf32, #tpu.memory_space<smem>>
    %8 = vector.broadcast %7 : f32 to vector<24x2xf32>
    %9 = arith.addf %6, %8 : vector<24x2xf32>
    %cst_9 = arith.constant 0.000000e+00 : f32
    %10 = vector.broadcast %cst_9 : f32 to vector<24x2xf32>
    %11 = arith.subf %10, %9 : vector<24x2xf32>
    %12 = math.exp %11 : vector<24x2xf32>
    %cst_10 = arith.constant 1.000000e+00 : f32
    %13 = vector.broadcast %cst_10 : f32 to vector<24x2xf32>
    %14 = arith.addf %13, %12 : vector<24x2xf32>
    %cst_11 = arith.constant 1.000000e+00 : f32
    %15 = vector.broadcast %cst_11 : f32 to vector<24x2xf32>
    %16 = arith.divf %15, %14 : vector<24x2xf32>
    %c0_12 = arith.constant 0 : index
    %c0_13 = arith.constant 0 : index
    %17 = vector.load %arg5[%c0_12, %c0_13] : memref<2x128xf32, #tpu.memory_space<vmem>>, vector<2x128xf32>
    %cst_14 = arith.constant dense<0.000000e+00> : vector<24x128xf32>
    %18 = tpu.matmul %16, %17, %cst_14 {dimension_numbers = #tpu.dot_dimension_numbers<[1], [0], [0], [1], [0, 0, 1, 1], [], []>} : vector<24x2xf32>, vector<2x128xf32>, vector<24x128xf32> -> vector<24x128xf32>
    %19 = arith.subf %0, %1 : vector<24x128xf32>
    %20 = arith.mulf %18, %19 : vector<24x128xf32>
    %21 = arith.addf %1, %20 : vector<24x128xf32>
    %c0_15 = arith.constant 0 : index
    %c0_16 = arith.constant 0 : index
    %22 = vector.load %arg7[%c0_15, %c0_16] : memref<24x128xf32, #tpu.memory_space<vmem>>, vector<24x128xf32>
    tpu.vector_store %arg7[%c0_15, %c0_16], %21 {strides = array<i32>} : memref<24x128xf32, #tpu.memory_space<vmem>>, vector<24x128xf32>,
    %c0_17 = arith.constant 0 : index
    %c0_18 = arith.constant 0 : index
    %23 = vector.load %arg8[%c0_17, %c0_18] : memref<24x2xf32, #tpu.memory_space<vmem>>, vector<24x2xf32>
    tpu.vector_store %arg8[%c0_17, %c0_18], %16 {strides = array<i32>} : memref<24x2xf32, #tpu.memory_space<vmem>>, vector<24x2xf32>,
    return
  }
  func.func @transform_0(%arg0: i32) -> (i32, i32) {
    %c0_i32 = arith.constant 0 : i32
    %c0_i32_0 = arith.constant 0 : i32
    return %arg0, %c0_i32 : i32, i32
  }
  func.func @transform_1(%arg0: i32) -> (i32, i32) {
    %c0_i32 = arith.constant 0 : i32
    %c0_i32_0 = arith.constant 0 : i32
    return %arg0, %c0_i32 : i32, i32
  }
  func.func @transform_2(%arg0: i32) -> (i32, i32) {
    %c0_i32 = arith.constant 0 : i32
    %c0_i32_0 = arith.constant 0 : i32
    %c0_i32_1 = arith.constant 0 : i32
    return %c0_i32, %c0_i32_0 : i32, i32
  }
  func.func @transform_3(%arg0: i32) -> (i32, i32) {
    %c0_i32 = arith.constant 0 : i32
    %c0_i32_0 = arith.constant 0 : i32
    %c0_i32_1 = arith.constant 0 : i32
    return %c0_i32, %c0_i32_0 : i32, i32
  }
  func.func @transform_4(%arg0: i32) -> (i32, i32) {
    %c0_i32 = arith.constant 0 : i32
    %c0_i32_0 = arith.constant 0 : i32
    %c0_i32_1 = arith.constant 0 : i32
    return %c0_i32, %c0_i32_0 : i32, i32
  }
  func.func @transform_5(%arg0: i32) -> i32 {
    %c0_i32 = arith.constant 0 : i32
    %c0_i32_0 = arith.constant 0 : i32
    return %c0_i32 : i32
  }
  func.func @transform_6(%arg0: i32) -> (i32, i32) {
    %c0_i32 = arith.constant 0 : i32
    %c0_i32_0 = arith.constant 0 : i32
    return %arg0, %c0_i32 : i32, i32
  }
  func.func @transform_7(%arg0: i32) -> (i32, i32) {
    %c0_i32 = arith.constant 0 : i32
    %c0_i32_0 = arith.constant 0 : i32
    return %arg0, %c0_i32 : i32, i32
  }
}

</mosaic_0001>

<llo_original>
// kernel: tpu_custom_call.1
$region0: #{tpu_custom_call.1}
  #allocation0 [shape = 'u32[]', space=smem, size = 0x4, offset = 0x4, fixed_abs, tag = 'smem constant byte address 0x4 - core index']
  #allocation1 [shape = 'u32[72,128]{1,0:T(1,128)}', space=vmem, size = 0x9000, scoped, tag = 'internal scratch']
  #allocation2 [shape = 'f32[1]{0:T(128)S(6)}', space=smem, size = 0x200, scoped, tag = 'scoped memory for tpu_custom_call.1']
  %s0 = inlined_call_operand.vmem [shape: f32[20,128], index: 0, kind: input, shape index: {}]
  %s1 = inlined_call_operand.vmem [shape: f32[20,128], index: 1, kind: input, shape index: {}]
  %s2 = inlined_call_operand.vmem [shape: f32[128,2], index: 2, kind: input, shape index: {}]
  %s3 = inlined_call_operand.vmem [shape: f32[128,2], index: 3, kind: input, shape index: {}]
  %s4 = inlined_call_operand.vmem [shape: f32[2,128], index: 4, kind: input, shape index: {}]
  %s5 = inlined_call_operand.<no memory space> [shape: f32[1], index: 5, kind: input, shape index: {}]
  %s6 = inlined_call_operand.hbm [shape: f32[20,128], index: 6, kind: output, shape index: {0}]
  %s7 = inlined_call_operand.vmem [shape: f32[20,2], index: 7, kind: output, shape index: {1}]
  %8 = xla_tuple %s6, %s7
  %s9 = sld [smem:[#allocation0]]
  $region42: #{tpu_custom_call.1} parent=0
    _
  %s11 = ssub.s32 1, %s9
  %s12 = scalar_select 0, %s11, %s9
  %13 = sst [smem:[#allocation2]] %s5
  $region1: #{tpu_custom_call.1} parent=0
    #allocation3 [shape = 'u8[12288]{0}', space=vmem, size = 0x3000, scoped, tag = 'output window, operand 0, single buffered']
    #allocation4 [shape = 's32[1]{0}', space=sflag, size = 0x4, scoped, tag = 'scoped memory for tpu_custom_call.1']
    %14 = vsyncpa [#allocation4], 0
    // Predicated region
    $region2: #{tpu_custom_call.1} parent=1 // pred_check
      _
    $region3: #{tpu_custom_call.1} parent=1 // pred_check_branch
      %16 = sbr.rel (0) target = $region5
    $region4: #{tpu_custom_call.1} parent=1 // pred_region
      _
    $region5: #{tpu_custom_call.1} parent=1 // pred_fallthru
      _
    // Predicated region
    $region6: #{tpu_custom_call.1} parent=1 // pred_check
      _
    $region7: #{tpu_custom_call.1} parent=1 // pred_check_branch
      %18 = sbr.rel (0) target = $region9
    $region8: #{tpu_custom_call.1} parent=1 // pred_region
      _
    $region9: #{tpu_custom_call.1} parent=1 // pred_fallthru
      _
    // Predicated region
    $region10: #{tpu_custom_call.1} parent=1 // pred_check
      _
    $region11: #{tpu_custom_call.1} parent=1 // pred_check_branch
      %20 = sbr.rel (0) target = $region13
    $region12: #{tpu_custom_call.1} parent=1 // pred_region
      _
    $region13: #{tpu_custom_call.1} parent=1 // pred_fallthru
      _
    // Predicated region
    $region14: #{tpu_custom_call.1} parent=1 // pred_check
      _
    $region15: #{tpu_custom_call.1} parent=1 // pred_check_branch
      %22 = sbr.rel (0) target = $region17
    $region16: #{tpu_custom_call.1} parent=1 // pred_region
      _
    $region17: #{tpu_custom_call.1} parent=1 // pred_fallthru
      _
    // Predicated region
    $region18: #{tpu_custom_call.1} parent=1 // pred_check
      _
    $region19: #{tpu_custom_call.1} parent=1 // pred_check_branch
      %24 = sbr.rel (0) target = $region21
    $region20: #{tpu_custom_call.1} parent=1 // pred_region
      _
    $region21: #{tpu_custom_call.1} parent=1 // pred_fallthru
      _
    // Predicated region
    $region22: #{tpu_custom_call.1} parent=1 // pred_check
      _
    $region23: #{tpu_custom_call.1} parent=1 // pred_check_branch
      %26 = sbr.rel (0) target = $region25
    $region24: #{tpu_custom_call.1} parent=1 // pred_region
      _
    $region25: #{tpu_custom_call.1} parent=1 // pred_fallthru
      _
    %v27 = vld [vmem:[%s0] sm:$0xff]
    %v28 = vld [vmem:[%s0 + $0x8] sm:$0xff]
    %v29 = vld [vmem:[%s0 + $0x10] sm:$0xff]
    %v30 = vld [vmem:[%s1] sm:$0xff]
    %v31 = vld [vmem:[%s1 + $0x8] sm:$0xff]
    %v32 = vld [vmem:[%s1 + $0x10] sm:$0xff]
    %v33 = vld [vmem:[%s2] sm:$0xff]
    %v34 = vld [vmem:[%s2 + $0x8] sm:$0xff]
    %v35 = vld [vmem:[%s2 + $0x10] sm:$0xff]
    %v36 = vld [vmem:[%s2 + $0x18] sm:$0xff]
    %v37 = vld [vmem:[%s2 + $0x20] sm:$0xff]
    %v38 = vld [vmem:[%s2 + $0x28] sm:$0xff]
    %v39 = vld [vmem:[%s2 + $0x30] sm:$0xff]
    %v40 = vld [vmem:[%s2 + $0x38] sm:$0xff]
    %v41 = vld [vmem:[%s2 + $0x40] sm:$0xff]
    %v42 = vld [vmem:[%s2 + $0x48] sm:$0xff]
    %v43 = vld [vmem:[%s2 + $0x50] sm:$0xff]
    %v44 = vld [vmem:[%s2 + $0x58] sm:$0xff]
    %v45 = vld [vmem:[%s2 + $0x60] sm:$0xff]
    %v46 = vld [vmem:[%s2 + $0x68] sm:$0xff]
    %v47 = vld [vmem:[%s2 + $0x70] sm:$0xff]
    %v48 = vld [vmem:[%s2 + $0x78] sm:$0xff]
    %v49 = vld [vmem:[%s3] sm:$0xff]
    %v50 = vld [vmem:[%s3 + $0x8] sm:$0xff]
    %v51 = vld [vmem:[%s3 + $0x10] sm:$0xff]
    %v52 = vld [vmem:[%s3 + $0x18] sm:$0xff]
    %v53 = vld [vmem:[%s3 + $0x20] sm:$0xff]
    %v54 = vld [vmem:[%s3 + $0x28] sm:$0xff]
    %v55 = vld [vmem:[%s3 + $0x30] sm:$0xff]
    %v56 = vld [vmem:[%s3 + $0x38] sm:$0xff]
    %v57 = vld [vmem:[%s3 + $0x40] sm:$0xff]
    %v58 = vld [vmem:[%s3 + $0x48] sm:$0xff]
    %v59 = vld [vmem:[%s3 + $0x50] sm:$0xff]
    %v60 = vld [vmem:[%s3 + $0x58] sm:$0xff]
    %v61 = vld [vmem:[%s3 + $0x60] sm:$0xff]
    %v62 = vld [vmem:[%s3 + $0x68] sm:$0xff]
    %v63 = vld [vmem:[%s3 + $0x70] sm:$0xff]
    %v64 = vld [vmem:[%s3 + $0x78] sm:$0xff]
    %65 = vmatpush.msra.mxu0 %v64
    %66 = vmatpush.msra.mxu0 %v63
    %67 = vmatpush.msra.mxu0 %v62
    %68 = vmatpush.msra.mxu0 %v61
    %69 = vmatpush.msra.mxu0 %v60
    %70 = vmatpush.msra.mxu0 %v59
    %71 = vmatpush.msra.mxu0 %v58
    %72 = vmatpush.msra.mxu0 %v57
    %73 = vmatpush.msra.mxu0 %v56
    %74 = vmatpush.msra.mxu0 %v55
    %75 = vmatpush.msra.mxu0 %v54
    %76 = vmatpush.msra.mxu0 %v53
    %77 = vmatpush.msra.mxu0 %v52
    %78 = vmatpush.msra.mxu0 %v51
    %79 = vmatpush.msra.mxu0 %v50
    %80 = vmatpush.msra.mxu0 %v49
    %81 = vmatmul.f32.gmra.mxu0 %v30
    %v82 = vpop.f32.mrf.mxu0
    %v83 = vadd.f32 0.0, %v82
    %84 = vmatmul.f32.gmra.mxu0 %v31
    %v85 = vpop.f32.mrf.mxu0
    %v86 = vadd.f32 0.0, %v85
    %87 = vmatmul.f32.gmra.mxu0 %v32
    %v88 = vpop.f32.mrf.mxu0
    %v89 = vadd.f32 0.0, %v88
    %90 = vdwg.mxu0
    %91 = vmatpush.msra.mxu0 %v48
    %92 = vmatpush.msra.mxu0 %v47
    %93 = vmatpush.msra.mxu0 %v46
    %94 = vmatpush.msra.mxu0 %v45
    %95 = vmatpush.msra.mxu0 %v44
    %96 = vmatpush.msra.mxu0 %v43
    %97 = vmatpush.msra.mxu0 %v42
    %98 = vmatpush.msra.mxu0 %v41
    %99 = vmatpush.msra.mxu0 %v40
    %100 = vmatpush.msra.mxu0 %v39
    %101 = vmatpush.msra.mxu0 %v38
    %102 = vmatpush.msra.mxu0 %v37
    %103 = vmatpush.msra.mxu0 %v36
    %104 = vmatpush.msra.mxu0 %v35
    %105 = vmatpush.msra.mxu0 %v34
    %106 = vmatpush.msra.mxu0 %v33
    %107 = vmatmul.f32.gmra.mxu0 %v27
    %v108 = vpop.f32.mrf.mxu0
    %v109 = vadd.f32 %v83, %v108
    %110 = vmatmul.f32.gmra.mxu0 %v28
    %v111 = vpop.f32.mrf.mxu0
    %v112 = vadd.f32 %v86, %v111
    %113 = vmatmul.f32.gmra.mxu0 %v29
    %v114 = vpop.f32.mrf.mxu0
    %v115 = vadd.f32 %v89, %v114
    %116 = vdwg.mxu0
    %s117 = sld [smem:[#allocation2]]
    %v118 = vstv %s117
    %v119 = vadd.f32 %v109, %v118
    %v120 = vadd.f32 %v112, %v118
    %v121 = vadd.f32 %v115, %v118
    %v122 = vsub.f32 0.0, %v119
    %v123 = vsub.f32 0.0, %v120
    %v124 = vsub.f32 0.0, %v121
    %v125 = vmul.f32 %v122, 1.442695
    %v126 = vpow.pop %v125
    %v127 = vmul.f32 %v123, 1.442695
    %v128 = vpow.pop %v127
    %v129 = vmul.f32 %v124, 1.442695
    %v130 = vpow.pop %v129
    %v131 = vadd.f32 %v126, 1.0
    %v132 = vadd.f32 %v128, 1.0
    %v133 = vadd.f32 %v130, 1.0
    %v134 = vrcp.pop %v131
    %v135 = vmul.f32 %v131, %v134
    %v136 = vsub.f32 1.0, %v135
    %v137 = vmul.f32 %v134, %v136
    %v138 = vadd.f32 %v134, %v137
    %vm139 = vweird.f32 %v131
    %vm140 = vweird.f32 %v134
    %vm141 = vmor %vm139, %vm140
    %v142 = vsel %vm141, %v134, %v138
    %v143 = vand.u32 2147483647, %v131
    %vm144 = vcmp.eq.f32.partialorder %v143, 8.507059e+37
    %v145 = vand.u32 %v131, 2147483648
    %v146 = vor.u32 1.1754944e-38, %v145
    %v147 = vsel %vm144, %v146, %v142
    %v148 = vmul.f32 1.0, %v147
    %v149 = vrcp.pop %v132
    %v150 = vmul.f32 %v132, %v149
    %v151 = vsub.f32 1.0, %v150
    %v152 = vmul.f32 %v149, %v151
    %v153 = vadd.f32 %v149, %v152
    %vm154 = vweird.f32 %v132
    %vm155 = vweird.f32 %v149
    %vm156 = vmor %vm154, %vm155
    %v157 = vsel %vm156, %v149, %v153
    %v158 = vand.u32 2147483647, %v132
    %vm159 = vcmp.eq.f32.partialorder %v158, 8.507059e+37
    %v160 = vand.u32 %v132, 2147483648
    %v161 = vor.u32 1.1754944e-38, %v160
    %v162 = vsel %vm159, %v161, %v157
    %v163 = vmul.f32 1.0, %v162
    %v164 = vrcp.pop %v133
    %v165 = vmul.f32 %v133, %v164
    %v166 = vsub.f32 1.0, %v165
    %v167 = vmul.f32 %v164, %v166
    %v168 = vadd.f32 %v164, %v167
    %vm169 = vweird.f32 %v133
    %vm170 = vweird.f32 %v164
    %vm171 = vmor %vm169, %vm170
    %v172 = vsel %vm171, %v164, %v168
    %v173 = vand.u32 2147483647, %v133
    %vm174 = vcmp.eq.f32.partialorder %v173, 8.507059e+37
    %v175 = vand.u32 %v133, 2147483648
    %v176 = vor.u32 1.1754944e-38, %v175
    %v177 = vsel %vm174, %v176, %v172
    %v178 = vmul.f32 1.0, %v177
    %v179 = vld [vmem:[%s4] sm:$0x3]
    %vm180 = vcmask 15360
    %v182 = vsel %vm180, %v148, 0
    %v185 = vsel %vm180, %v163, 0
    %v188 = vsel %vm180, %v178, 0
    %vm190 = vcmask 1041408
    %v192 = vsel %vm190, %v179, 0
    %194 = vmatpush.msra.mxu0 0.0
    %195 = vmatpush.msra.mxu0 0.0
    %196 = vmatpush.msra.mxu0 0.0
    %197 = vmatpush.msra.mxu0 0.0
    %198 = vmatpush.msra.mxu0 0.0
    %199 = vmatpush.msra.mxu0 0.0
    %200 = vmatpush.msra.mxu0 0.0
    %201 = vmatpush.msra.mxu0 0.0
    %202 = vmatpush.msra.mxu0 0.0
    %203 = vmatpush.msra.mxu0 0.0
    %204 = vmatpush.msra.mxu0 0.0
    %205 = vmatpush.msra.mxu0 0.0
    %206 = vmatpush.msra.mxu0 0.0
    %207 = vmatpush.msra.mxu0 0.0
    %208 = vmatpush.msra.mxu0 0.0
    %209 = vmatpush.msra.mxu0 %v192
    %210 = vmatmul.f32.gmra.mxu0 %v182
    %v211 = vpop.f32.mrf.mxu0
    %v212 = vadd.f32 0.0, %v211
    %213 = vmatmul.f32.gmra.mxu0 %v185
    %v214 = vpop.f32.mrf.mxu0
    %v215 = vadd.f32 0.0, %v214
    %216 = vmatmul.f32.gmra.mxu0 %v188
    %v217 = vpop.f32.mrf.mxu0
    %v218 = vadd.f32 0.0, %v217
    %219 = vdwg.mxu0
    %v220 = vsub.f32 %v27, %v30
    %v221 = vsub.f32 %v28, %v31
    %v222 = vsub.f32 %v29, %v32
    %v223 = vmul.f32 %v212, %v220
    %v224 = vmul.f32 %v215, %v221
    %v225 = vmul.f32 %v218, %v222
    %v226 = vadd.f32 %v30, %v223
    %v227 = vadd.f32 %v31, %v224
    %v228 = vadd.f32 %v32, %v225
    %229 = vst [vmem:[#allocation3] sm:$0xff] %v226
    %230 = vst [vmem:[#allocation3 + $0x8] sm:$0xff] %v227
    %231 = vst [vmem:[#allocation3 + $0x10] sm:$0xff] %v228
    %232 = vst.msk [vmem:[%s7] sm:$0xff] %vm180, %v148
    %233 = vst.msk [vmem:[%s7 + $0x8] sm:$0xff] %vm180, %v163
    %234 = vst.msk [vmem:[%s7 + $0x10] sm:$0xff] %vm180, %v178
    // Predicated region
    $region26: #{tpu_custom_call.1} parent=1 // pred_check
      _
    $region27: #{tpu_custom_call.1} parent=1 // pred_check_branch
      %236 = sbr.rel (0) target = $region29
    $region28: #{tpu_custom_call.1} parent=1 // pred_region
      %238 = vsyncadd [#allocation4], 0
      %s239 = sshll.u32 [#allocation3], 4
      %s240 = int_to_ptr.vmem [resolvable:$true] %s239
      %s241 = sshll.u32 %s6, 4
      %s242 = int_to_ptr.hbm [resolvable:$true] %s241
      %247 = dma.vmem_to_hbm [thread:$0]  %s240, 384, %s242, [#allocation4], 128, 128, 8
    $region29: #{tpu_custom_call.1} parent=1 // pred_fallthru
      _
    // Predicated region
    $region30: #{tpu_custom_call.1} parent=1 // pred_check
      _
    $region31: #{tpu_custom_call.1} parent=1 // pred_check_branch
      %249 = sbr.rel (0) target = $region33
    $region32: #{tpu_custom_call.1} parent=1 // pred_region
      _
    $region33: #{tpu_custom_call.1} parent=1 // pred_fallthru
      _
    // Predicated region
    $region34: #{tpu_custom_call.1} parent=1 // pred_check
      _
    $region35: #{tpu_custom_call.1} parent=1 // pred_check_branch
      %251 = sbr.rel (0) target = $region37
    $region36: #{tpu_custom_call.1} parent=1 // pred_region
      %253 = dma.done [#allocation4], 384
    $region37: #{tpu_custom_call.1} parent=1 // pred_fallthru
      _
    // Predicated region
    $region38: #{tpu_custom_call.1} parent=1 // pred_check
      _
    $region39: #{tpu_custom_call.1} parent=1 // pred_check_branch
      %255 = sbr.rel (0) target = $region41
    $region40: #{tpu_custom_call.1} parent=1 // pred_region
      _
    $region41: #{tpu_custom_call.1} parent=1 // pred_fallthru
      _
    %256 = vsyncpa [#allocation4], 1

</llo_original>
